<compile_context>
chip_gen: v5e
topology: v5e:2x2
jax: 0.10.0
libtpu: 0.0.40
codegen_flags: <defaults>
</compile_context>

<pallas_src>
import functools

import jax
import jax.numpy as jnp
from jax.experimental import pallas as pl
from jax.experimental.pallas import tpu as pltpu


def _tps_kernel(coef_ref, out_ref, f_ref, *, tile, out_w, px, py,
                step_x, step_y, n):
    """One lane-dense tile of `tile` flattened pixels.

    coef_ref : (2B, n+3) f32 VMEM   row = [A0, A1, A2, W_0..W_{n-1}]
    out_ref  : (2B, tile) f32 VMEM  rows 0..B-1 -> X', rows B..2B-1 -> Y'
    f_ref    : (n+3, tile) f32 VMEM scratch, basis matrix [1, gx, gy, U_k]
    """
    t = pl.program_id(0)

    # Flattened pixel index for every lane of this tile (lane-dense layout).
    p = jax.lax.broadcasted_iota(jnp.int32, (1, tile), 1) + t * tile
    p_f = p.astype(jnp.float32)
    # row/col without vector integer division (exact for p < 2**23 pixels).
    row_f = jnp.floor((p_f + jnp.float32(0.5)) * jnp.float32(1.0 / out_w))
    col_f = p_f - row_f * jnp.float32(out_w)
    gx = jnp.float32(-1.0) + col_f * jnp.float32(step_x)
    gy = jnp.float32(-1.0) + row_f * jnp.float32(step_y)

    # Build the batch-invariant basis F once per tile (reused for all batches).
    f_ref[0:1, :] = jnp.ones((1, tile), jnp.float32)
    f_ref[1:2, :] = gx
    f_ref[2:3, :] = gy
    for k in range(n):  # n is tiny and static (grid_size^2 == 9)
        dx = gx - jnp.float32(px[k])     # control points baked as constants
        dy = gy - jnp.float32(py[k])
        d2 = dx * dx + dy * dy
        d2 = jnp.where(d2 == 0.0, jnp.float32(1.0), d2)
        f_ref[3 + k:4 + k, :] = d2 * jnp.log(d2)

    # Single MXU pass: (2B, n+3) @ (n+3, tile) -> (2B, tile).
    out_ref[...] = jnp.dot(coef_ref[...], f_ref[...],
                           preferred_element_type=jnp.float32)


def _compute_L_inverse(P_X, P_Y, reg_factor=0.0):
    # P_X, P_Y: (N,) float32
    N = P_X.shape[0]
    Xc = P_X[:, None]
    Yc = P_Y[:, None]
    d2 = (Xc - Xc.T) ** 2 + (Yc - Yc.T) ** 2
    d2 = jnp.where(d2 == 0.0, 1.0, d2)
    K = d2 * jnp.log(d2)
    if reg_factor != 0.0:
        K = K + jnp.eye(N, dtype=jnp.float32) * reg_factor
    O = jnp.ones((N, 1), jnp.float32)
    P = jnp.concatenate([O, Xc, Yc], axis=1)                      # (N, 3)
    Z = jnp.zeros((3, 3), jnp.float32)
    L = jnp.concatenate(
        [jnp.concatenate([K, P], axis=1),
         jnp.concatenate([P.T, Z], axis=1)], axis=0)              # (N+3, N+3)
    return jnp.linalg.inv(L).astype(jnp.float32)


def tps_grid_gen(theta, *, out_h=16, out_w=16, grid_size=3, reg_factor=0.0):
    """Replicates TpsGridGen.forward(theta) -> (B, out_h, out_w, 2)."""
    N = grid_size * grid_size
    theta = jnp.asarray(theta, jnp.float32).reshape(theta.shape[0], 2 * N)
    B = theta.shape[0]

    # --- control points as Python floats (baked into the kernel) ------------
    if grid_size > 1:
        axis = [-1.0 + 2.0 * i / (grid_size - 1) for i in range(grid_size)]
    else:
        axis = [-1.0]
    px = tuple(axis[k // grid_size] for k in range(N))   # numpy 'xy' meshgrid
    py = tuple(axis[k % grid_size] for k in range(N))

    P_X = jnp.array(px, jnp.float32)
    P_Y = jnp.array(py, jnp.float32)
    Li = _compute_L_inverse(P_X, P_Y, reg_factor)                 # (N+3, N+3)

    # tiny per-batch (9x9)@(9,) and (3x9)@(9,) products -> plain JAX
    Q_X = theta[:, :N]                                            # (B, N)
    Q_Y = theta[:, N:]                                            # (B, N)
    W_X = jnp.einsum('ij,bj->bi', Li[:N, :N], Q_X)                # (B, N)
    W_Y = jnp.einsum('ij,bj->bi', Li[:N, :N], Q_Y)                # (B, N)
    A_X = jnp.einsum('ij,bj->bi', Li[N:, :N], Q_X)                # (B, 3)
    A_Y = jnp.einsum('ij,bj->bi', Li[N:, :N], Q_Y)                # (B, 3)

    # Merge all coefficients into one (2B, N+3) matrix: rows 0..B-1 -> X',
    # rows B..2B-1 -> Y'; columns ordered to match F rows [1, gx, gy, U_k].
    coef = jnp.concatenate(
        [jnp.concatenate([A_X, W_X], axis=1),
         jnp.concatenate([A_Y, W_Y], axis=1)], axis=0)            # (2B, N+3)

    # --- lane-dense pixel tiling --------------------------------------------
    HW = out_h * out_w
    hw_pad = ((HW + 127) // 128) * 128
    tile = min(1024, hw_pad)            # 512-1024 lanes per block is plenty
    num_tiles = -(-HW // tile)
    total = num_tiles * tile

    step_x = 2.0 / (out_w - 1) if out_w > 1 else 0.0
    step_y = 2.0 / (out_h - 1) if out_h > 1 else 0.0

    kernel = functools.partial(_tps_kernel, tile=tile, out_w=out_w,
                               px=px, py=py, step_x=step_x, step_y=step_y,
                               n=N)

    out = pl.pallas_call(
        kernel,
        out_shape=jax.ShapeDtypeStruct((2 * B, total), jnp.float32),
        grid_spec=pltpu.PrefetchScalarGridSpec(
            num_scalar_prefetch=0,
            grid=(num_tiles,),
            in_specs=[
                pl.BlockSpec((2 * B, N + 3), lambda t: (0, 0)),   # coef (VMEM)
            ],
            out_specs=pl.BlockSpec((2 * B, tile), lambda t: (0, t)),
            scratch_shapes=[pltpu.VMEM((N + 3, tile), jnp.float32)],
        ),
        compiler_params=pltpu.CompilerParams(
            dimension_semantics=("parallel",)),
    )(coef)

    out_x = out[:B, :HW].reshape(B, out_h, out_w)
    out_y = out[B:, :HW].reshape(B, out_h, out_w)
    # final concat along channel dim, matching torch.cat((X', Y'), 3)
    return jnp.stack([out_x, out_y], axis=-1)                     # (B, H, W, 2)


def _tps_reference(theta, *, out_h=16, out_w=16, grid_size=3, reg_factor=0.0):
    """Pure-JAX reference for correctness checking."""
    N = grid_size * grid_size
    theta = jnp.asarray(theta, jnp.float32).reshape(theta.shape[0], 2 * N)
    axis_coords = jnp.linspace(-1.0, 1.0, grid_size)
    P_Ym, P_Xm = jnp.meshgrid(axis_coords, axis_coords)
    P_X = P_Xm.reshape(-1).astype(jnp.float32)
    P_Y = P_Ym.reshape(-1).astype(jnp.float32)
    Li = _compute_L_inverse(P_X, P_Y, reg_factor)
    Q_X, Q_Y = theta[:, :N], theta[:, N:]
    W_X = jnp.einsum('ij,bj->bi', Li[:N, :N], Q_X)
    W_Y = jnp.einsum('ij,bj->bi', Li[:N, :N], Q_Y)
    A_X = jnp.einsum('ij,bj->bi', Li[N:, :N], Q_X)
    A_Y = jnp.einsum('ij,bj->bi', Li[N:, :N], Q_Y)
    gx = jnp.broadcast_to(jnp.linspace(-1.0, 1.0, out_w)[None, :], (out_h, out_w))
    gy = jnp.broadcast_to(jnp.linspace(-1.0, 1.0, out_h)[:, None], (out_h, out_w))
    dx = gx[None, :, :, None] - P_X[None, None, None, :]
    dy = gy[None, :, :, None] - P_Y[None, None, None, :]
    d2 = dx * dx + dy * dy
    d2 = jnp.where(d2 == 0.0, 1.0, d2)
    U = d2 * jnp.log(d2)
    xp = (A_X[:, None, None, 0] + A_X[:, None, None, 1] * gx[None]
          + A_X[:, None, None, 2] * gy[None]
          + jnp.sum(W_X[:, None, None, :] * U, axis=-1))
    yp = (A_Y[:, None, None, 0] + A_Y[:, None, None, 1] * gx[None]
          + A_Y[:, None, None, 2] * gy[None]
          + jnp.sum(W_Y[:, None, None, :] * U, axis=-1))
    return jnp.stack([xp, yp], axis=-1)


if __name__ == "__main__":
    B, GRID_SIZE, OUT_H, OUT_W = 2, 3, 16, 16
    N = GRID_SIZE * GRID_SIZE

    key = jax.random.PRNGKey(0)
    # theta: (B, 2N) -- deterministic small perturbation of the identity grid
    base = jnp.concatenate([
        jnp.tile(jnp.linspace(-1.0, 1.0, GRID_SIZE), (GRID_SIZE,)).reshape(
            GRID_SIZE, GRID_SIZE).T.reshape(-1),     # control-point X coords
        jnp.tile(jnp.linspace(-1.0, 1.0, GRID_SIZE), (GRID_SIZE,)),  # Y coords
    ])
    theta = base[None, :] + 0.1 * jax.random.normal(key, (B, 2 * N), jnp.float32)

    out = tps_grid_gen(theta, out_h=OUT_H, out_w=OUT_W, grid_size=GRID_SIZE)
    out = jax.block_until_ready(out)

    ref = _tps_reference(theta, out_h=OUT_H, out_w=OUT_W, grid_size=GRID_SIZE)
    assert out.shape == (B, OUT_H, OUT_W, 2), out.shape
    assert jnp.allclose(out, ref, atol=1e-4, rtol=1e-4), float(
        jnp.max(jnp.abs(out - ref)))
    print("KERNEL_OK")
</pallas_src>

<mosaic_0001>
module attributes {stable_mosaic.version = 11 : i64} {
  func.func @_tps_kernel(%arg0: i32, %arg1: memref<4x12xf32, #tpu.memory_space<vmem>>, %arg2: memref<4x256xf32, #tpu.memory_space<vmem>>, %arg3: memref<12x256xf32, #tpu.memory_space<vmem>>) attributes {dimension_semantics = [#tpu.dimension_semantics<parallel>], iteration_bounds = array<i64: 1>, scalar_prefetch = 0 : i64, scratch_operands = 1 : i64, tpu.core_type = #tpu.core_type<tc>, window_params = [{pipeline_mode = #tpu.pipeline_mode<synchronous>, transform_indices = @transform_0, window_bounds = array<i64: 4, 12>}, {transform_indices = @transform_1, window_bounds = array<i64: 4, 256>}]} {
    %0 = tpu.iota {dimensions = array<i32: 1>} : vector<1x256xi32>
    %c256_i32 = arith.constant 256 : i32
    %1 = arith.muli %arg0, %c256_i32 : i32
    %2 = vector.broadcast %1 : i32 to vector<1x256xi32>
    %3 = arith.addi %0, %2 : vector<1x256xi32>
    %4 = arith.sitofp %3 : vector<1x256xi32> to vector<1x256xf32>
    %cst = arith.constant 5.000000e-01 : f32
    %5 = vector.broadcast %cst : f32 to vector<1x256xf32>
    %6 = arith.addf %4, %5 : vector<1x256xf32>
    %cst_0 = arith.constant 6.250000e-02 : f32
    %7 = vector.broadcast %cst_0 : f32 to vector<1x256xf32>
    %8 = arith.mulf %6, %7 : vector<1x256xf32>
    %9 = math.floor %8 : vector<1x256xf32>
    %cst_1 = arith.constant 1.600000e+01 : f32
    %10 = vector.broadcast %cst_1 : f32 to vector<1x256xf32>
    %11 = arith.mulf %9, %10 : vector<1x256xf32>
    %12 = arith.subf %4, %11 : vector<1x256xf32>
    %cst_2 = arith.constant 0.13333334 : f32
    %13 = vector.broadcast %cst_2 : f32 to vector<1x256xf32>
    %14 = arith.mulf %12, %13 : vector<1x256xf32>
    %cst_3 = arith.constant -1.000000e+00 : f32
    %15 = vector.broadcast %cst_3 : f32 to vector<1x256xf32>
    %16 = arith.addf %15, %14 : vector<1x256xf32>
    %cst_4 = arith.constant 0.13333334 : f32
    %17 = vector.broadcast %cst_4 : f32 to vector<1x256xf32>
    %18 = arith.mulf %9, %17 : vector<1x256xf32>
    %cst_5 = arith.constant -1.000000e+00 : f32
    %19 = vector.broadcast %cst_5 : f32 to vector<1x256xf32>
    %20 = arith.addf %19, %18 : vector<1x256xf32>
    %cst_6 = arith.constant 1.000000e+00 : f32
    %21 = vector.broadcast %cst_6 : f32 to vector<1x256xf32>
    %c0 = arith.constant 0 : index
    %c0_7 = arith.constant 0 : index
    %22 = vector.load %arg3[%c0, %c0_7] : memref<12x256xf32, #tpu.memory_space<vmem>>, vector<1x256xf32>
    tpu.vector_store %arg3[%c0, %c0_7], %21 {strides = array<i32>} : memref<12x256xf32, #tpu.memory_space<vmem>>, vector<1x256xf32>,
    %c1 = arith.constant 1 : index
    %c0_8 = arith.constant 0 : index
    %23 = vector.load %arg3[%c1, %c0_8] : memref<12x256xf32, #tpu.memory_space<vmem>>, vector<1x256xf32>
    tpu.vector_store %arg3[%c1, %c0_8], %16 {strides = array<i32>} : memref<12x256xf32, #tpu.memory_space<vmem>>, vector<1x256xf32>,
    %c2 = arith.constant 2 : index
    %c0_9 = arith.constant 0 : index
    %24 = vector.load %arg3[%c2, %c0_9] : memref<12x256xf32, #tpu.memory_space<vmem>>, vector<1x256xf32>
    tpu.vector_store %arg3[%c2, %c0_9], %20 {strides = array<i32>} : memref<12x256xf32, #tpu.memory_space<vmem>>, vector<1x256xf32>,
    %cst_10 = arith.constant -1.000000e+00 : f32
    %25 = vector.broadcast %cst_10 : f32 to vector<1x256xf32>
    %26 = arith.subf %16, %25 : vector<1x256xf32>
    %cst_11 = arith.constant -1.000000e+00 : f32
    %27 = vector.broadcast %cst_11 : f32 to vector<1x256xf32>
    %28 = arith.subf %20, %27 : vector<1x256xf32>
    %29 = arith.mulf %26, %26 : vector<1x256xf32>
    %30 = arith.mulf %28, %28 : vector<1x256xf32>
    %31 = arith.addf %29, %30 : vector<1x256xf32>
    %cst_12 = arith.constant 0.000000e+00 : f32
    %32 = vector.broadcast %cst_12 : f32 to vector<1x256xf32>
    %33 = arith.cmpf oeq, %31, %32 : vector<1x256xf32>
    %cst_13 = arith.constant 1.000000e+00 : f32
    %34 = vector.broadcast %cst_13 : f32 to vector<1x256xf32>
    %35 = arith.select %33, %34, %31 : vector<1x256xi1>, vector<1x256xf32>
    %36 = math.log %35 : vector<1x256xf32>
    %37 = arith.mulf %35, %36 : vector<1x256xf32>
    %c3 = arith.constant 3 : index
    %c0_14 = arith.constant 0 : index
    %38 = vector.load %arg3[%c3, %c0_14] : memref<12x256xf32, #tpu.memory_space<vmem>>, vector<1x256xf32>
    tpu.vector_store %arg3[%c3, %c0_14], %37 {strides = array<i32>} : memref<12x256xf32, #tpu.memory_space<vmem>>, vector<1x256xf32>,
    %cst_15 = arith.constant -1.000000e+00 : f32
    %39 = vector.broadcast %cst_15 : f32 to vector<1x256xf32>
    %40 = arith.subf %16, %39 : vector<1x256xf32>
    %cst_16 = arith.constant 0.000000e+00 : f32
    %41 = vector.broadcast %cst_16 : f32 to vector<1x256xf32>
    %42 = arith.subf %20, %41 : vector<1x256xf32>
    %43 = arith.mulf %40, %40 : vector<1x256xf32>
    %44 = arith.mulf %42, %42 : vector<1x256xf32>
    %45 = arith.addf %43, %44 : vector<1x256xf32>
    %cst_17 = arith.constant 0.000000e+00 : f32
    %46 = vector.broadcast %cst_17 : f32 to vector<1x256xf32>
    %47 = arith.cmpf oeq, %45, %46 : vector<1x256xf32>
    %cst_18 = arith.constant 1.000000e+00 : f32
    %48 = vector.broadcast %cst_18 : f32 to vector<1x256xf32>
    %49 = arith.select %47, %48, %45 : vector<1x256xi1>, vector<1x256xf32>
    %50 = math.log %49 : vector<1x256xf32>
    %51 = arith.mulf %49, %50 : vector<1x256xf32>
    %c4 = arith.constant 4 : index
    %c0_19 = arith.constant 0 : index
    %52 = vector.load %arg3[%c4, %c0_19] : memref<12x256xf32, #tpu.memory_space<vmem>>, vector<1x256xf32>
    tpu.vector_store %arg3[%c4, %c0_19], %51 {strides = array<i32>} : memref<12x256xf32, #tpu.memory_space<vmem>>, vector<1x256xf32>,
    %cst_20 = arith.constant -1.000000e+00 : f32
    %53 = vector.broadcast %cst_20 : f32 to vector<1x256xf32>
    %54 = arith.subf %16, %53 : vector<1x256xf32>
    %cst_21 = arith.constant 1.000000e+00 : f32
    %55 = vector.broadcast %cst_21 : f32 to vector<1x256xf32>
    %56 = arith.subf %20, %55 : vector<1x256xf32>
    %57 = arith.mulf %54, %54 : vector<1x256xf32>
    %58 = arith.mulf %56, %56 : vector<1x256xf32>
    %59 = arith.addf %57, %58 : vector<1x256xf32>
    %cst_22 = arith.constant 0.000000e+00 : f32
    %60 = vector.broadcast %cst_22 : f32 to vector<1x256xf32>
    %61 = arith.cmpf oeq, %59, %60 : vector<1x256xf32>
    %cst_23 = arith.constant 1.000000e+00 : f32
    %62 = vector.broadcast %cst_23 : f32 to vector<1x256xf32>
    %63 = arith.select %61, %62, %59 : vector<1x256xi1>, vector<1x256xf32>
    %64 = math.log %63 : vector<1x256xf32>
    %65 = arith.mulf %63, %64 : vector<1x256xf32>
    %c5 = arith.constant 5 : index
    %c0_24 = arith.constant 0 : index
    %66 = vector.load %arg3[%c5, %c0_24] : memref<12x256xf32, #tpu.memory_space<vmem>>, vector<1x256xf32>
    tpu.vector_store %arg3[%c5, %c0_24], %65 {strides = array<i32>} : memref<12x256xf32, #tpu.memory_space<vmem>>, vector<1x256xf32>,
    %cst_25 = arith.constant 0.000000e+00 : f32
    %67 = vector.broadcast %cst_25 : f32 to vector<1x256xf32>
    %68 = arith.subf %16, %67 : vector<1x256xf32>
    %cst_26 = arith.constant -1.000000e+00 : f32
    %69 = vector.broadcast %cst_26 : f32 to vector<1x256xf32>
    %70 = arith.subf %20, %69 : vector<1x256xf32>
    %71 = arith.mulf %68, %68 : vector<1x256xf32>
    %72 = arith.mulf %70, %70 : vector<1x256xf32>
    %73 = arith.addf %71, %72 : vector<1x256xf32>
    %cst_27 = arith.constant 0.000000e+00 : f32
    %74 = vector.broadcast %cst_27 : f32 to vector<1x256xf32>
    %75 = arith.cmpf oeq, %73, %74 : vector<1x256xf32>
    %cst_28 = arith.constant 1.000000e+00 : f32
    %76 = vector.broadcast %cst_28 : f32 to vector<1x256xf32>
    %77 = arith.select %75, %76, %73 : vector<1x256xi1>, vector<1x256xf32>
    %78 = math.log %77 : vector<1x256xf32>
    %79 = arith.mulf %77, %78 : vector<1x256xf32>
    %c6 = arith.constant 6 : index
    %c0_29 = arith.constant 0 : index
    %80 = vector.load %arg3[%c6, %c0_29] : memref<12x256xf32, #tpu.memory_space<vmem>>, vector<1x256xf32>
    tpu.vector_store %arg3[%c6, %c0_29], %79 {strides = array<i32>} : memref<12x256xf32, #tpu.memory_space<vmem>>, vector<1x256xf32>,
    %cst_30 = arith.constant 0.000000e+00 : f32
    %81 = vector.broadcast %cst_30 : f32 to vector<1x256xf32>
    %82 = arith.subf %16, %81 : vector<1x256xf32>
    %cst_31 = arith.constant 0.000000e+00 : f32
    %83 = vector.broadcast %cst_31 : f32 to vector<1x256xf32>
    %84 = arith.subf %20, %83 : vector<1x256xf32>
    %85 = arith.mulf %82, %82 : vector<1x256xf32>
    %86 = arith.mulf %84, %84 : vector<1x256xf32>
    %87 = arith.addf %85, %86 : vector<1x256xf32>
    %cst_32 = arith.constant 0.000000e+00 : f32
    %88 = vector.broadcast %cst_32 : f32 to vector<1x256xf32>
    %89 = arith.cmpf oeq, %87, %88 : vector<1x256xf32>
    %cst_33 = arith.constant 1.000000e+00 : f32
    %90 = vector.broadcast %cst_33 : f32 to vector<1x256xf32>
    %91 = arith.select %89, %90, %87 : vector<1x256xi1>, vector<1x256xf32>
    %92 = math.log %91 : vector<1x256xf32>
    %93 = arith.mulf %91, %92 : vector<1x256xf32>
    %c7 = arith.constant 7 : index
    %c0_34 = arith.constant 0 : index
    %94 = vector.load %arg3[%c7, %c0_34] : memref<12x256xf32, #tpu.memory_space<vmem>>, vector<1x256xf32>
    tpu.vector_store %arg3[%c7, %c0_34], %93 {strides = array<i32>} : memref<12x256xf32, #tpu.memory_space<vmem>>, vector<1x256xf32>,
    %cst_35 = arith.constant 0.000000e+00 : f32
    %95 = vector.broadcast %cst_35 : f32 to vector<1x256xf32>
    %96 = arith.subf %16, %95 : vector<1x256xf32>
    %cst_36 = arith.constant 1.000000e+00 : f32
    %97 = vector.broadcast %cst_36 : f32 to vector<1x256xf32>
    %98 = arith.subf %20, %97 : vector<1x256xf32>
    %99 = arith.mulf %96, %96 : vector<1x256xf32>
    %100 = arith.mulf %98, %98 : vector<1x256xf32>
    %101 = arith.addf %99, %100 : vector<1x256xf32>
    %cst_37 = arith.constant 0.000000e+00 : f32
    %102 = vector.broadcast %cst_37 : f32 to vector<1x256xf32>
    %103 = arith.cmpf oeq, %101, %102 : vector<1x256xf32>
    %cst_38 = arith.constant 1.000000e+00 : f32
    %104 = vector.broadcast %cst_38 : f32 to vector<1x256xf32>
    %105 = arith.select %103, %104, %101 : vector<1x256xi1>, vector<1x256xf32>
    %106 = math.log %105 : vector<1x256xf32>
    %107 = arith.mulf %105, %106 : vector<1x256xf32>
    %c8 = arith.constant 8 : index
    %c0_39 = arith.constant 0 : index
    %108 = vector.load %arg3[%c8, %c0_39] : memref<12x256xf32, #tpu.memory_space<vmem>>, vector<1x256xf32>
    tpu.vector_store %arg3[%c8, %c0_39], %107 {strides = array<i32>} : memref<12x256xf32, #tpu.memory_space<vmem>>, vector<1x256xf32>,
    %cst_40 = arith.constant 1.000000e+00 : f32
    %109 = vector.broadcast %cst_40 : f32 to vector<1x256xf32>
    %110 = arith.subf %16, %109 : vector<1x256xf32>
    %cst_41 = arith.constant -1.000000e+00 : f32
    %111 = vector.broadcast %cst_41 : f32 to vector<1x256xf32>
    %112 = arith.subf %20, %111 : vector<1x256xf32>
    %113 = arith.mulf %110, %110 : vector<1x256xf32>
    %114 = arith.mulf %112, %112 : vector<1x256xf32>
    %115 = arith.addf %113, %114 : vector<1x256xf32>
    %cst_42 = arith.constant 0.000000e+00 : f32
    %116 = vector.broadcast %cst_42 : f32 to vector<1x256xf32>
    %117 = arith.cmpf oeq, %115, %116 : vector<1x256xf32>
    %cst_43 = arith.constant 1.000000e+00 : f32
    %118 = vector.broadcast %cst_43 : f32 to vector<1x256xf32>
    %119 = arith.select %117, %118, %115 : vector<1x256xi1>, vector<1x256xf32>
    %120 = math.log %119 : vector<1x256xf32>
    %121 = arith.mulf %119, %120 : vector<1x256xf32>
    %c9 = arith.constant 9 : index
    %c0_44 = arith.constant 0 : index
    %122 = vector.load %arg3[%c9, %c0_44] : memref<12x256xf32, #tpu.memory_space<vmem>>, vector<1x256xf32>
    tpu.vector_store %arg3[%c9, %c0_44], %121 {strides = array<i32>} : memref<12x256xf32, #tpu.memory_space<vmem>>, vector<1x256xf32>,
    %cst_45 = arith.constant 1.000000e+00 : f32
    %123 = vector.broadcast %cst_45 : f32 to vector<1x256xf32>
    %124 = arith.subf %16, %123 : vector<1x256xf32>
    %cst_46 = arith.constant 0.000000e+00 : f32
    %125 = vector.broadcast %cst_46 : f32 to vector<1x256xf32>
    %126 = arith.subf %20, %125 : vector<1x256xf32>
    %127 = arith.mulf %124, %124 : vector<1x256xf32>
    %128 = arith.mulf %126, %126 : vector<1x256xf32>
    %129 = arith.addf %127, %128 : vector<1x256xf32>
    %cst_47 = arith.constant 0.000000e+00 : f32
    %130 = vector.broadcast %cst_47 : f32 to vector<1x256xf32>
    %131 = arith.cmpf oeq, %129, %130 : vector<1x256xf32>
    %cst_48 = arith.constant 1.000000e+00 : f32
    %132 = vector.broadcast %cst_48 : f32 to vector<1x256xf32>
    %133 = arith.select %131, %132, %129 : vector<1x256xi1>, vector<1x256xf32>
    %134 = math.log %133 : vector<1x256xf32>
    %135 = arith.mulf %133, %134 : vector<1x256xf32>
    %c10 = arith.constant 10 : index
    %c0_49 = arith.constant 0 : index
    %136 = vector.load %arg3[%c10, %c0_49] : memref<12x256xf32, #tpu.memory_space<vmem>>, vector<1x256xf32>
    tpu.vector_store %arg3[%c10, %c0_49], %135 {strides = array<i32>} : memref<12x256xf32, #tpu.memory_space<vmem>>, vector<1x256xf32>,
    %cst_50 = arith.constant 1.000000e+00 : f32
    %137 = vector.broadcast %cst_50 : f32 to vector<1x256xf32>
    %138 = arith.subf %16, %137 : vector<1x256xf32>
    %cst_51 = arith.constant 1.000000e+00 : f32
    %139 = vector.broadcast %cst_51 : f32 to vector<1x256xf32>
    %140 = arith.subf %20, %139 : vector<1x256xf32>
    %141 = arith.mulf %138, %138 : vector<1x256xf32>
    %142 = arith.mulf %140, %140 : vector<1x256xf32>
    %143 = arith.addf %141, %142 : vector<1x256xf32>
    %cst_52 = arith.constant 0.000000e+00 : f32
    %144 = vector.broadcast %cst_52 : f32 to vector<1x256xf32>
    %145 = arith.cmpf oeq, %143, %144 : vector<1x256xf32>
    %cst_53 = arith.constant 1.000000e+00 : f32
    %146 = vector.broadcast %cst_53 : f32 to vector<1x256xf32>
    %147 = arith.select %145, %146, %143 : vector<1x256xi1>, vector<1x256xf32>
    %148 = math.log %147 : vector<1x256xf32>
    %149 = arith.mulf %147, %148 : vector<1x256xf32>
    %c11 = arith.constant 11 : index
    %c0_54 = arith.constant 0 : index
    %150 = vector.load %arg3[%c11, %c0_54] : memref<12x256xf32, #tpu.memory_space<vmem>>, vector<1x256xf32>
    tpu.vector_store %arg3[%c11, %c0_54], %149 {strides = array<i32>} : memref<12x256xf32, #tpu.memory_space<vmem>>, vector<1x256xf32>,
    %c0_55 = arith.constant 0 : index
    %c0_56 = arith.constant 0 : index
    %151 = vector.load %arg1[%c0_55, %c0_56] : memref<4x12xf32, #tpu.memory_space<vmem>>, vector<4x12xf32>
    %c0_57 = arith.constant 0 : index
    %c0_58 = arith.constant 0 : index
    %152 = vector.load %arg3[%c0_57, %c0_58] : memref<12x256xf32, #tpu.memory_space<vmem>>, vector<12x256xf32>
    %cst_59 = arith.constant dense<0.000000e+00> : vector<4x256xf32>
    %153 = tpu.matmul %151, %152, %cst_59 {dimension_numbers = #tpu.dot_dimension_numbers<[1], [0], [0], [1], [0, 0, 1, 1], [], []>} : vector<4x12xf32>, vector<12x256xf32>, vector<4x256xf32> -> vector<4x256xf32>
    %c0_60 = arith.constant 0 : index
    %c0_61 = arith.constant 0 : index
    %154 = vector.load %arg2[%c0_60, %c0_61] : memref<4x256xf32, #tpu.memory_space<vmem>>, vector<4x256xf32>
    tpu.vector_store %arg2[%c0_60, %c0_61], %153 {strides = array<i32>} : memref<4x256xf32, #tpu.memory_space<vmem>>, vector<4x256xf32>,
    return
  }
  func.func @transform_0(%arg0: i32) -> (i32, i32) {
    %c0_i32 = arith.constant 0 : i32
    %c0_i32_0 = arith.constant 0 : i32
    %c0_i32_1 = arith.constant 0 : i32
    return %c0_i32, %c0_i32_0 : i32, i32
  }
  func.func @transform_1(%arg0: i32) -> (i32, i32) {
    %c0_i32 = arith.constant 0 : i32
    %c0_i32_0 = arith.constant 0 : i32
    return %c0_i32, %arg0 : i32, i32
  }
}

</mosaic_0001>

<llo_original>
// kernel: tpu_custom_call.1
$region0: #{tpu_custom_call.1}
  #allocation0 [shape = 'u32[]', space=smem, size = 0x4, offset = 0x4, fixed_abs, tag = 'smem constant byte address 0x4 - core index']
  #allocation1 [shape = 'u32[72,128]{1,0:T(1,128)}', space=vmem, size = 0x9000, scoped, tag = 'internal scratch']
  #allocation2 [shape = 'f32[12,256]{1,0:T(8,128)}', space=vmem, size = 0x4000, scoped, tag = 'scratch operand']
  %s0 = inlined_call_operand.hbm [shape: f32[4,12], index: 0, kind: input, shape index: {}]
  %s1 = inlined_call_operand.hbm [shape: f32[4,256], index: 1, kind: output, shape index: {}]
  %s2 = sld [smem:[#allocation0]]
  $region18: #{tpu_custom_call.1} parent=0
    _
  %s4 = ssub.s32 1, %s2
  %s5 = scalar_select 0, %s4, %s2
  $region1: #{tpu_custom_call.1} parent=0
    #allocation3 [shape = 'u8[2048]{0}', space=vmem, size = 0x800, scoped, tag = 'input window, operand 0, single buffered']
    #allocation4 [shape = 's32[1]{0}', space=sflag, size = 0x4, scoped, tag = 'scoped memory for tpu_custom_call.1']
    #allocation5 [shape = 's32[1]{0}', space=sflag, size = 0x4, scoped, tag = 'scoped memory for tpu_custom_call.1']
    #allocation6 [shape = 'u8[4096]{0}', space=vmem, size = 0x1000, scoped, tag = 'output window, operand 0, single buffered']
    %6 = vsyncpa [#allocation4], 0
    %7 = vsyncpa [#allocation5], 0
    // Predicated region
    $region2: #{tpu_custom_call.1} parent=1 // pred_check
      _
    $region3: #{tpu_custom_call.1} parent=1 // pred_check_branch
      %9 = sbr.rel (0) target = $region5
    $region4: #{tpu_custom_call.1} parent=1 // pred_region
      %11 = vsyncadd [#allocation4], 0
      %s13 = sshll.u32 %s0, 4
      %s14 = int_to_ptr.hbm [resolvable:$true] %s13
      %s15 = sshll.u32 [#allocation3], 4
      %s16 = int_to_ptr.vmem [resolvable:$true] %s15
      %18 = dma.hbm_to_vmem [thread:$0]  %s14, 64, %s16, [#allocation4]
    $region5: #{tpu_custom_call.1} parent=1 // pred_fallthru
      _
    // Predicated region
    $region6: #{tpu_custom_call.1} parent=1 // pred_check
      _
    $region7: #{tpu_custom_call.1} parent=1 // pred_check_branch
      %20 = sbr.rel (0) target = $region9
    $region8: #{tpu_custom_call.1} parent=1 // pred_region
      %22 = dma.done [#allocation4], 64
    $region9: #{tpu_custom_call.1} parent=1 // pred_fallthru
      _
    %v23 = vlaneseq
    %v24 = vand.u32 %v23, 127
    %v25 = vadd.s32 %v24, 128
    %s26 = smul.u32 0, 256
    %v27 = vstv %s26
    %v28 = vadd.s32 %v24, %v27
    %v29 = vadd.s32 %v25, %v27
    %v30 = vcvt.s32.f32 %v28
    %v31 = vcvt.s32.f32 %v29
    %v32 = vadd.f32 %v30, 0.5
    %v33 = vadd.f32 %v31, 0.5
    %v34 = vmul.f32 %v32, 0.0625
    %v35 = vmul.f32 %v33, 0.0625
    %v36 = vfloor.f32 %v34
    %v37 = vfloor.f32 %v35
    %v38 = vmul.f32 %v36, 16.0
    %v39 = vmul.f32 %v37, 16.0
    %v40 = vsub.f32 %v30, %v38
    %v41 = vsub.f32 %v31, %v39
    %v42 = vmul.f32 %v40, 0.13333334
    %v43 = vmul.f32 %v41, 0.13333334
    %v44 = vadd.f32 %v42, -1.0
    %v45 = vadd.f32 %v43, -1.0
    %v46 = vmul.f32 %v36, 0.13333334
    %v47 = vmul.f32 %v37, 0.13333334
    %v48 = vadd.f32 %v46, -1.0
    %v49 = vadd.f32 %v47, -1.0
    %v50 = vlaneseq
    %vm51 = vcmp.ge.s32.totalorder %v50, 0
    %vm52 = vcmp.lt.s32.totalorder %v50, 256
    %vm53 = vmand %vm51, %vm52
    %54 = vst.msk [vmem:[#allocation2] ss:$8 sm:$0x3] %vm53, 1.0
    %55 = vst.msk [vmem:[#allocation2] ss:$8 sm:$0x0] %vm53, 1.0
    %v58 = vrot.slane %v45, 7
    %vm59 = vcmask 1040384
    %v60 = vsel %vm59, %v44, %v58
    %s62 = scalar_lea.vmem [#allocation2], 1
    %63 = vst.msk [vmem:[%s62] ss:$8 sm:$0x3] %vm53, %v60
    %64 = vst.msk [vmem:[%s62] ss:$8 sm:$0x0] %vm53, %v60
    %v67 = vrot.slane %v49, 7
    %v68 = vsel %vm59, %v48, %v67
    %s70 = scalar_lea.vmem [#allocation2], 2
    %71 = vst.msk [vmem:[%s70] ss:$8 sm:$0x3] %vm53, %v68
    %72 = vst.msk [vmem:[%s70] ss:$8 sm:$0x0] %vm53, %v68
    %v73 = vsub.f32 %v44, -1.0
    %v74 = vsub.f32 %v45, -1.0
    %v75 = vsub.f32 %v48, -1.0
    %v76 = vsub.f32 %v49, -1.0
    %v77 = vmul.f32 %v73, %v73
    %v78 = vmul.f32 %v74, %v74
    %v79 = vmul.f32 %v75, %v75
    %v80 = vmul.f32 %v76, %v76
    %v81 = vadd.f32 %v77, %v79
    %v82 = vadd.f32 %v78, %v80
    %vm83 = vcmp.eq.f32.partialorder %v81, 0.0
    %vm84 = vcmp.eq.f32.partialorder %v82, 0.0
    %v85 = vsel %vm83, 1.0, %v81
    %v86 = vsel %vm84, 1.0, %v82
    %v87 = vlog2.pop %v85
    %v88 = vmul.f32 %v87, 0.6931472
    %v89 = vlog2.pop %v86
    %v90 = vmul.f32 %v89, 0.6931472
    %v91 = vmul.f32 %v85, %v88
    %v92 = vmul.f32 %v86, %v90
    %v95 = vrot.slane %v92, 7
    %v96 = vsel %vm59, %v91, %v95
    %s98 = scalar_lea.vmem [#allocation2], 3
    %99 = vst.msk [vmem:[%s98] ss:$8 sm:$0x3] %vm53, %v96
    %100 = vst.msk [vmem:[%s98] ss:$8 sm:$0x0] %vm53, %v96
    %v101 = vmul.f32 %v48, %v48
    %v102 = vmul.f32 %v49, %v49
    %v103 = vadd.f32 %v77, %v101
    %v104 = vadd.f32 %v78, %v102
    %vm105 = vcmp.eq.f32.partialorder %v103, 0.0
    %vm106 = vcmp.eq.f32.partialorder %v104, 0.0
    %v107 = vsel %vm105, 1.0, %v103
    %v108 = vsel %vm106, 1.0, %v104
    %v109 = vlog2.pop %v107
    %v110 = vmul.f32 %v109, 0.6931472
    %v111 = vlog2.pop %v108
    %v112 = vmul.f32 %v111, 0.6931472
    %v113 = vmul.f32 %v107, %v110
    %v114 = vmul.f32 %v108, %v112
    %v117 = vrot.slane %v114, 7
    %v118 = vsel %vm59, %v113, %v117
    %s120 = scalar_lea.vmem [#allocation2], 4
    %121 = vst.msk [vmem:[%s120] ss:$8 sm:$0x3] %vm53, %v118
    %122 = vst.msk [vmem:[%s120] ss:$8 sm:$0x0] %vm53, %v118
    %v123 = vsub.f32 %v48, 1.0
    %v124 = vsub.f32 %v49, 1.0
    %v125 = vmul.f32 %v123, %v123
    %v126 = vmul.f32 %v124, %v124
    %v127 = vadd.f32 %v77, %v125
    %v128 = vadd.f32 %v78, %v126
    %vm129 = vcmp.eq.f32.partialorder %v127, 0.0
    %vm130 = vcmp.eq.f32.partialorder %v128, 0.0
    %v131 = vsel %vm129, 1.0, %v127
    %v132 = vsel %vm130, 1.0, %v128
    %v133 = vlog2.pop %v131
    %v134 = vmul.f32 %v133, 0.6931472
    %v135 = vlog2.pop %v132
    %v136 = vmul.f32 %v135, 0.6931472
    %v137 = vmul.f32 %v131, %v134
    %v138 = vmul.f32 %v132, %v136
    %v141 = vrot.slane %v138, 7
    %v142 = vsel %vm59, %v137, %v141
    %s144 = scalar_lea.vmem [#allocation2], 5
    %145 = vst.msk [vmem:[%s144] ss:$8 sm:$0x3] %vm53, %v142
    %146 = vst.msk [vmem:[%s144] ss:$8 sm:$0x0] %vm53, %v142
    %v147 = vmul.f32 %v44, %v44
    %v148 = vmul.f32 %v45, %v45
    %v149 = vadd.f32 %v147, %v79
    %v150 = vadd.f32 %v148, %v80
    %vm151 = vcmp.eq.f32.partialorder %v149, 0.0
    %vm152 = vcmp.eq.f32.partialorder %v150, 0.0
    %v153 = vsel %vm151, 1.0, %v149
    %v154 = vsel %vm152, 1.0, %v150
    %v155 = vlog2.pop %v153
    %v156 = vmul.f32 %v155, 0.6931472
    %v157 = vlog2.pop %v154
    %v158 = vmul.f32 %v157, 0.6931472
    %v159 = vmul.f32 %v153, %v156
    %v160 = vmul.f32 %v154, %v158
    %v163 = vrot.slane %v160, 7
    %v164 = vsel %vm59, %v159, %v163
    %s166 = scalar_lea.vmem [#allocation2], 6
    %167 = vst.msk [vmem:[%s166] ss:$8 sm:$0x3] %vm53, %v164
    %168 = vst.msk [vmem:[%s166] ss:$8 sm:$0x0] %vm53, %v164
    %v169 = vadd.f32 %v147, %v101
    %v170 = vadd.f32 %v148, %v102
    %vm171 = vcmp.eq.f32.partialorder %v169, 0.0
    %vm172 = vcmp.eq.f32.partialorder %v170, 0.0
    %v173 = vsel %vm171, 1.0, %v169
    %v174 = vsel %vm172, 1.0, %v170
    %v175 = vlog2.pop %v173
    %v176 = vmul.f32 %v175, 0.6931472
    %v177 = vlog2.pop %v174
    %v178 = vmul.f32 %v177, 0.6931472
    %v179 = vmul.f32 %v173, %v176
    %v180 = vmul.f32 %v174, %v178
    %v183 = vrot.slane %v180, 7
    %v184 = vsel %vm59, %v179, %v183
    %s186 = scalar_lea.vmem [#allocation2], 7
    %187 = vst.msk [vmem:[%s186] ss:$8 sm:$0x3] %vm53, %v184
    %188 = vst.msk [vmem:[%s186] ss:$8 sm:$0x0] %vm53, %v184
    %v189 = vadd.f32 %v147, %v125
    %v190 = vadd.f32 %v148, %v126
    %vm191 = vcmp.eq.f32.partialorder %v189, 0.0
    %vm192 = vcmp.eq.f32.partialorder %v190, 0.0
    %v193 = vsel %vm191, 1.0, %v189
    %v194 = vsel %vm192, 1.0, %v190
    %v195 = vlog2.pop %v193
    %v196 = vmul.f32 %v195, 0.6931472
    %v197 = vlog2.pop %v194
    %v198 = vmul.f32 %v197, 0.6931472
    %v199 = vmul.f32 %v193, %v196
    %v200 = vmul.f32 %v194, %v198
    %v203 = vrot.slane %v200, 7
    %v204 = vsel %vm59, %v199, %v203
    %s206 = scalar_lea.vmem [#allocation2], 16
    %207 = vst.msk [vmem:[%s206] ss:$8 sm:$0x3] %vm53, %v204
    %208 = vst.msk [vmem:[%s206] ss:$8 sm:$0x0] %vm53, %v204
    %v209 = vsub.f32 %v44, 1.0
    %v210 = vsub.f32 %v45, 1.0
    %v211 = vmul.f32 %v209, %v209
    %v212 = vmul.f32 %v210, %v210
    %v213 = vadd.f32 %v211, %v79
    %v214 = vadd.f32 %v212, %v80
    %vm215 = vcmp.eq.f32.partialorder %v213, 0.0
    %vm216 = vcmp.eq.f32.partialorder %v214, 0.0
    %v217 = vsel %vm215, 1.0, %v213
    %v218 = vsel %vm216, 1.0, %v214
    %v219 = vlog2.pop %v217
    %v220 = vmul.f32 %v219, 0.6931472
    %v221 = vlog2.pop %v218
    %v222 = vmul.f32 %v221, 0.6931472
    %v223 = vmul.f32 %v217, %v220
    %v224 = vmul.f32 %v218, %v222
    %v227 = vrot.slane %v224, 7
    %v228 = vsel %vm59, %v223, %v227
    %s230 = scalar_lea.vmem [#allocation2], 17
    %231 = vst.msk [vmem:[%s230] ss:$8 sm:$0x3] %vm53, %v228
    %232 = vst.msk [vmem:[%s230] ss:$8 sm:$0x0] %vm53, %v228
    %v233 = vadd.f32 %v211, %v101
    %v234 = vadd.f32 %v212, %v102
    %vm235 = vcmp.eq.f32.partialorder %v233, 0.0
    %vm236 = vcmp.eq.f32.partialorder %v234, 0.0
    %v237 = vsel %vm235, 1.0, %v233
    %v238 = vsel %vm236, 1.0, %v234
    %v239 = vlog2.pop %v237
    %v240 = vmul.f32 %v239, 0.6931472
    %v241 = vlog2.pop %v238
    %v242 = vmul.f32 %v241, 0.6931472
    %v243 = vmul.f32 %v237, %v240
    %v244 = vmul.f32 %v238, %v242
    %v247 = vrot.slane %v244, 7
    %v248 = vsel %vm59, %v243, %v247
    %s250 = scalar_lea.vmem [#allocation2], 18
    %251 = vst.msk [vmem:[%s250] ss:$8 sm:$0x3] %vm53, %v248
    %252 = vst.msk [vmem:[%s250] ss:$8 sm:$0x0] %vm53, %v248
    %v253 = vadd.f32 %v211, %v125
    %v254 = vadd.f32 %v212, %v126
    %vm255 = vcmp.eq.f32.partialorder %v253, 0.0
    %vm256 = vcmp.eq.f32.partialorder %v254, 0.0
    %v257 = vsel %vm255, 1.0, %v253
    %v258 = vsel %vm256, 1.0, %v254
    %v259 = vlog2.pop %v257
    %v260 = vmul.f32 %v259, 0.6931472
    %v261 = vlog2.pop %v258
    %v262 = vmul.f32 %v261, 0.6931472
    %v263 = vmul.f32 %v257, %v260
    %v264 = vmul.f32 %v258, %v262
    %v267 = vrot.slane %v264, 7
    %v268 = vsel %vm59, %v263, %v267
    %s270 = scalar_lea.vmem [#allocation2], 19
    %271 = vst.msk [vmem:[%s270] ss:$8 sm:$0x3] %vm53, %v268
    %272 = vst.msk [vmem:[%s270] ss:$8 sm:$0x0] %vm53, %v268
    %v273 = vld [vmem:[#allocation3] sm:$0xf]
    %v274 = vld [vmem:[#allocation2] sm:$0xff]
    %v275 = vld [vmem:[#allocation2 + $0x8] sm:$0xff]
    %v276 = vld [vmem:[#allocation2 + $0x10] sm:$0xf]
    %v277 = vld [vmem:[#allocation2 + $0x18] sm:$0xf]
    %vm278 = vcmask 97280
    %v280 = vsel %vm278, %v273, 0
    %vm282 = vcmask 1043456
    %v284 = vsel %vm282, %v276, 0
    %v287 = vsel %vm282, %v277, 0
    %289 = vmatpush.msra.mxu0 0.0
    %290 = vmatpush.msra.mxu0 0.0
    %291 = vmatpush.msra.mxu0 0.0
    %292 = vmatpush.msra.mxu0 0.0
    %293 = vmatpush.msra.mxu0 0.0
    %294 = vmatpush.msra.mxu0 0.0
    %295 = vmatpush.msra.mxu0 0.0
    %296 = vmatpush.msra.mxu0 0.0
    %297 = vmatpush.msra.mxu0 0.0
    %298 = vmatpush.msra.mxu0 0.0
    %299 = vmatpush.msra.mxu0 0.0
    %300 = vmatpush.msra.mxu0 0.0
    %301 = vmatpush.msra.mxu0 0.0
    %302 = vmatpush.msra.mxu0 0.0
    %303 = vmatpush.msra.mxu0 %v284
    %304 = vmatpush.msra.mxu0 %v274
    %305 = vmatmul.f32.gmra.mxu0 %v280
    %v306 = vpop.f32.mrf.mxu0
    %v307 = vadd.f32 0.0, %v306
    %308 = vdwg.mxu0
    %309 = vmatpush.msra.mxu0 0.0
    %310 = vmatpush.msra.mxu0 0.0
    %311 = vmatpush.msra.mxu0 0.0
    %312 = vmatpush.msra.mxu0 0.0
    %313 = vmatpush.msra.mxu0 0.0
    %314 = vmatpush.msra.mxu0 0.0
    %315 = vmatpush.msra.mxu0 0.0
    %316 = vmatpush.msra.mxu0 0.0
    %317 = vmatpush.msra.mxu0 0.0
    %318 = vmatpush.msra.mxu0 0.0
    %319 = vmatpush.msra.mxu0 0.0
    %320 = vmatpush.msra.mxu0 0.0
    %321 = vmatpush.msra.mxu0 0.0
    %322 = vmatpush.msra.mxu0 0.0
    %323 = vmatpush.msra.mxu0 %v287
    %324 = vmatpush.msra.mxu0 %v275
    %325 = vmatmul.f32.gmra.mxu0 %v280
    %v326 = vpop.f32.mrf.mxu0
    %v327 = vadd.f32 0.0, %v326
    %328 = vdwg.mxu0
    %v331 = vrot.slane %v327, 4
    %v332 = vsel %vm282, %v307, %v331
    %334 = vst [vmem:[#allocation6] sm:$0xff] %v332
    // Predicated region
    $region10: #{tpu_custom_call.1} parent=1 // pred_check
      _
    $region11: #{tpu_custom_call.1} parent=1 // pred_check_branch
      %336 = sbr.rel (0) target = $region13
    $region12: #{tpu_custom_call.1} parent=1 // pred_region
      %338 = vsyncadd [#allocation5], 0
      %s340 = sshll.u32 [#allocation6], 4
      %s341 = int_to_ptr.vmem [resolvable:$true] %s340
      %s342 = sshll.u32 %s1, 4
      %s343 = int_to_ptr.hbm [resolvable:$true] %s342
      %345 = dma.vmem_to_hbm [thread:$0]  %s341, 128, %s343, [#allocation5]
    $region13: #{tpu_custom_call.1} parent=1 // pred_fallthru
      _
    // Predicated region
    $region14: #{tpu_custom_call.1} parent=1 // pred_check
      _
    $region15: #{tpu_custom_call.1} parent=1 // pred_check_branch
      %347 = sbr.rel (0) target = $region17
    $region16: #{tpu_custom_call.1} parent=1 // pred_region
      %349 = dma.done [#allocation5], 128
    $region17: #{tpu_custom_call.1} parent=1 // pred_fallthru
      _
    %350 = vsyncpa [#allocation4], 1
    %351 = vsyncpa [#allocation5], 1

</llo_original>
